<compile_context>
chip_gen: v5e
topology: v5e:2x2
jax: 0.10.0
libtpu: 0.0.40
codegen_flags: <defaults>
</compile_context>

<pallas_src>
import jax
import jax.numpy as jnp
from jax.experimental import pallas as pl
from jax.experimental.pallas import tpu as pltpu

_MIB = 1024 * 1024


def _vardrop_kernel(mask_ref, x_ref, o_ref):
    # mask_ref: (1, B, TF) scale in {0, 1/(1-p)}, same dtype as x.
    # x_ref / o_ref: (TT, B, TF).  Broadcast multiply along the time axis.
    o_ref[...] = (x_ref[...] * mask_ref[...]).astype(o_ref.dtype)


def _round_up(x, m):
    return -(-x // m) * m


def _vmem_budget():
    """(vmem_limit_bytes, target_block_bytes) tuned per TPU generation."""
    try:
        cap = int(pltpu.get_tpu_info().vmem_capacity_bytes)
    except Exception:
        cap = 64 * _MIB                      # unknown -> assume v7x (most constrained)
    if cap <= 64 * _MIB:                     # v7x: 64 MiB VMEM, ~3.2 TB/s HBM
        return 48 * _MIB, 8 * _MIB
    return 96 * _MIB, 12 * _MIB              # v5e / v6e: 128 MiB VMEM


def _pick_tiles(T, B, F, itemsize, vmem_limit, target_block):
    """Choose (time_tile, feature_tile) so double-buffered in+out blocks fit VMEM."""
    pB = _round_up(B, 8)                     # sublane padding of the (B, F) slab
    usable = int(vmem_limit * 0.75)          # headroom for mask buffers / scratch
    max_block = max(1, usable // 4)          # 2 bufs x (in + out)
    block_target = min(target_block, max_block)

    TF = F
    row_bytes = pB * _round_up(TF, 128) * itemsize
    if row_bytes > block_target and F > 128:
        # One time step is already too big: tile the feature axis too
        # (lane tile must be a multiple of 128 for legality / unmasked stores).
        TF = max(128, ((block_target // (pB * itemsize)) // 128) * 128)
        row_bytes = pB * TF * itemsize
    # TODO(synk): pathological case (huge B, tiny F) would additionally need a
    # batch-axis tile (multiple of 8); not implemented.

    TT = max(1, block_target // row_bytes)
    if T >= 2:
        TT = min(TT, -(-T // 2))             # >= 2 grid steps so v7x megacore helps
    TT = min(TT, T)
    return TT, TF


def variational_dropout(x, dropout: float, key, training: bool = True,
                        donate_x: bool = False):
    """x: dense (T, B, F) tensor, batch_first=False. Returns same shape/dtype."""
    # TODO(synk): PackedSequence inputs are not supported; dense (T, B, F) only.
    if (not training) or dropout <= 0.0:
        return x
    if dropout >= 1.0:
        # Keep probability 0: every element is dropped.
        return jnp.zeros_like(x)

    T, B, F = x.shape
    keep_prob = 1.0 - float(dropout)
    itemsize = jnp.dtype(x.dtype).itemsize

    # Per-(batch, feature) mask shared across all time steps, pre-scaled so the
    # kernel hot path is a single multiply.  Cast to x.dtype so bf16 stays bf16.
    mask_dtype = x.dtype if jnp.issubdtype(x.dtype, jnp.floating) else jnp.float32
    keep = jax.random.bernoulli(key, p=keep_prob, shape=(1, B, F))
    mask = jnp.where(keep, 1.0 / keep_prob, 0.0).astype(mask_dtype)

    vmem_limit, target_block = _vmem_budget()
    TT, TF = _pick_tiles(T, B, F, itemsize, vmem_limit, target_block)
    grid = (pl.cdiv(T, TT), pl.cdiv(F, TF))

    cost = pl.CostEstimate(
        flops=T * B * F,
        transcendentals=0,
        bytes_accessed=2 * T * B * F * itemsize
        + B * F * jnp.dtype(mask_dtype).itemsize,
    )

    kwargs = {}
    if donate_x:
        kwargs["input_output_aliases"] = {1: 0}   # mask is input 0, x is input 1

    return pl.pallas_call(
        _vardrop_kernel,
        out_shape=jax.ShapeDtypeStruct((T, B, F), x.dtype),
        grid_spec=pl.GridSpec(
            grid=grid,
            in_specs=[
                pl.BlockSpec((1, B, TF), lambda t, f: (0, 0, f)),   # mask (resident)
                pl.BlockSpec((TT, B, TF), lambda t, f: (t, 0, f)),  # x
            ],
            out_specs=pl.BlockSpec((TT, B, TF), lambda t, f: (t, 0, f)),
        ),
        compiler_params=pltpu.CompilerParams(
            dimension_semantics=("parallel", "parallel"),
            vmem_limit_bytes=vmem_limit,
        ),
        cost_estimate=cost,
        **kwargs,
    )(mask, x)


if __name__ == "__main__":
    root = jax.random.PRNGKey(0)
    kx, km = jax.random.split(root)

    T, B, F = 8, 4, 128              # (seq, batch, features), batch_first=False
    dropout = 0.3
    keep_prob = 1.0 - dropout

    x = jax.random.normal(kx, (T, B, F), dtype=jnp.float32)

    out = jax.block_until_ready(variational_dropout(x, dropout, km, training=True))

    # --- sanity checks of the variational-dropout contract ---
    # Reference uses the same mask derivation as the wrapper (shared across T).
    keep = jax.random.bernoulli(km, p=keep_prob, shape=(1, B, F))
    ref = jnp.where(keep, x / keep_prob, jnp.zeros_like(x))

    assert out.shape == x.shape and out.dtype == x.dtype
    assert bool(jnp.allclose(out, ref, atol=1e-5, rtol=1e-5)), "output mismatch vs reference"

    # Dropped (batch, feature) positions are exactly zero at EVERY time step.
    assert bool(jnp.all(jnp.where(~keep, out == 0.0, True))), \
        "mask not shared across the temporal dimension"

    # Eval mode / p <= 0 are identity; p >= 1 drops everything.
    assert bool(jnp.all(variational_dropout(x, dropout, km, training=False) == x))
    assert bool(jnp.all(variational_dropout(x, 0.0, km, training=True) == x))
    assert bool(jnp.all(variational_dropout(x, 1.0, km, training=True) == 0.0))

    print("KERNEL_OK")
</pallas_src>

<mosaic_0001>
module attributes {stable_mosaic.version = 11 : i64} {
  func.func @_vardrop_kernel(%arg0: i32, %arg1: i32, %arg2: memref<1x4x128xf32, #tpu.memory_space<vmem>>, %arg3: memref<4x4x128xf32, #tpu.memory_space<vmem>>, %arg4: memref<4x4x128xf32, #tpu.memory_space<vmem>>) attributes {dimension_semantics = [#tpu.dimension_semantics<parallel>, #tpu.dimension_semantics<parallel>], iteration_bounds = array<i64: 2, 1>, scalar_prefetch = 0 : i64, scratch_operands = 0 : i64, tpu.core_type = #tpu.core_type<tc>, window_params = [{transform_indices = @transform_0, window_bounds = array<i64: 1, 4, 128>}, {transform_indices = @transform_1, window_bounds = array<i64: 4, 4, 128>}, {transform_indices = @transform_2, window_bounds = array<i64: 4, 4, 128>}]} {
    %c0 = arith.constant 0 : index
    %c0_0 = arith.constant 0 : index
    %c0_1 = arith.constant 0 : index
    %0 = vector.load %arg3[%c0, %c0_0, %c0_1] : memref<4x4x128xf32, #tpu.memory_space<vmem>>, vector<4x4x128xf32>
    %c0_2 = arith.constant 0 : index
    %c0_3 = arith.constant 0 : index
    %c0_4 = arith.constant 0 : index
    %1 = vector.load %arg2[%c0_2, %c0_3, %c0_4] : memref<1x4x128xf32, #tpu.memory_space<vmem>>, vector<1x4x128xf32>
    %2 = vector.broadcast %1 : vector<1x4x128xf32> to vector<4x4x128xf32>
    %3 = arith.mulf %0, %2 : vector<4x4x128xf32>
    %c0_5 = arith.constant 0 : index
    %c0_6 = arith.constant 0 : index
    %c0_7 = arith.constant 0 : index
    %4 = vector.load %arg4[%c0_5, %c0_6, %c0_7] : memref<4x4x128xf32, #tpu.memory_space<vmem>>, vector<4x4x128xf32>
    tpu.vector_store %arg4[%c0_5, %c0_6, %c0_7], %3 {strides = array<i32>} : memref<4x4x128xf32, #tpu.memory_space<vmem>>, vector<4x4x128xf32>,
    return
  }
  func.func @transform_0(%arg0: i32, %arg1: i32) -> (i32, i32, i32) {
    %c0_i32 = arith.constant 0 : i32
    %c0_i32_0 = arith.constant 0 : i32
    %c0_i32_1 = arith.constant 0 : i32
    return %c0_i32, %c0_i32_0, %arg1 : i32, i32, i32
  }
  func.func @transform_1(%arg0: i32, %arg1: i32) -> (i32, i32, i32) {
    %c0_i32 = arith.constant 0 : i32
    %c0_i32_0 = arith.constant 0 : i32
    return %arg0, %c0_i32, %arg1 : i32, i32, i32
  }
  func.func @transform_2(%arg0: i32, %arg1: i32) -> (i32, i32, i32) {
    %c0_i32 = arith.constant 0 : i32
    %c0_i32_0 = arith.constant 0 : i32
    return %arg0, %c0_i32, %arg1 : i32, i32, i32
  }
}

</mosaic_0001>

<llo_original>
// kernel: tpu_custom_call.1
$region0: #{tpu_custom_call.1}
  #allocation0 [shape = 'u32[]', space=smem, size = 0x4, offset = 0x4, fixed_abs, tag = 'smem constant byte address 0x4 - core index']
  #allocation1 [shape = 'u32[72,128]{1,0:T(1,128)}', space=vmem, size = 0x9000, scoped, tag = 'internal scratch']
  %s0 = inlined_call_operand.hbm [shape: f32[1,4,128], index: 0, kind: input, shape index: {}]
  %s1 = inlined_call_operand.hbm [shape: f32[8,4,128], index: 1, kind: input, shape index: {}]
  %s2 = inlined_call_operand.hbm [shape: f32[8,4,128], index: 2, kind: output, shape index: {}]
  %s3 = sld [smem:[#allocation0]]
  $region49: #{tpu_custom_call.1} parent=0
    _
  %s5 = ssub.s32 1, %s3
  %s6 = scalar_select 0, %s5, %s3
  $region1: #{tpu_custom_call.1} parent=0
    #allocation2 [shape = 'u8[2048]{0}', space=vmem, size = 0x800, scoped, tag = 'input window, operand 0, single buffered']
    #allocation3 [shape = 's32[2]{0}', space=sflag, size = 0x8, scoped, tag = 'scoped memory for tpu_custom_call.1']
    #allocation4 [shape = 's32[2]{0}', space=sflag, size = 0x8, scoped, tag = 'scoped memory for tpu_custom_call.1']
    #allocation5 [shape = 'u8[16384]{0}', space=vmem, size = 0x4000, scoped, tag = 'input window, operand 1']
    #allocation6 [shape = 's32[2]{0}', space=sflag, size = 0x8, scoped, tag = 'scoped memory for tpu_custom_call.1']
    #allocation7 [shape = 'u8[16384]{0}', space=vmem, size = 0x4000, scoped, tag = 'output window, operand 0']
    %7 = vsyncpa [#allocation3], 0
    %8 = vsyncpa [#allocation6], 0
    %s9 = scalar_lea.sflag [#allocation6], 1
    %10 = vsyncpa %s9, 0
    %11 = vsyncpa [#allocation4], 0
    %s12 = scalar_lea.sflag [#allocation4], 1
    %13 = vsyncpa %s12, 0
    loop: start=0, step=1, limit=4
    $region2: #{tpu_custom_call.1} parent=1 // loop_pre_header
      _
    $region3: #{tpu_custom_call.1} parent=1 // loop_header
      %s15 = sphi 0, %s19
      %p16 = scmp.ge.s32.totalorder %s15, 4
      %s22 = sphi 0, %s34
      %s23 = sphi 0, %s30
      %s24 = sphi 0, %s22
      %s25 = sphi 0, %s23
      %s26 = sphi 0, %s24
      %s27 = sphi 0, %s25
      %s37 = sphi 0, %s39
      %s40 = sphi 0, %s37
      %s41 = sphi 0, %s40
      %s57 = sphi 0, %s41
      %s65 = sphi 0, %s67
      %s68 = sphi 0, %s65
      %s69 = sphi 0, %s68
      %s85 = sphi 0, %s69
      %s93 = sphi 0, %s95
      %s96 = sphi 0, %s93
      %s97 = sphi 0, %s96
      %s113 = sphi 0, %s97
    $region4: #{tpu_custom_call.1} parent=1 // loop_header_branch
      %18 = sbr.rel (%p16) target = $region8
    $region5: #{tpu_custom_call.1} parent=1 // loop_body
      %s20 = ssub.s32 %s15, 1
      %s21 = ssub.s32 %s15, 2
      %s28 = sadd.s32 1, %s23
      %p29 = scmp.ge.s32.totalorder %s28, 1
      %s30 = scalar_select %p29, 0, %s28
      %s31 = sadd.s32 1, %s22
      %s32 = scalar_select %p29, %s31, %s22
      %p33 = scmp.ge.s32.totalorder %s32, 2
      %s34 = scalar_select %p33, 0, %s32
      %s35 = ssub.s32 %s23, %s30
      %p36 = scmp.eq.s32.totalorder %s35, 0
      %s38 = sadd.s32 %s37, 1
      %s39 = scalar_select %p36, %s37, %s38
      %p42 = pneg %p36
      %p43 = scmp.eq.s32.totalorder %s15, 1
      %p44 = por %p42, %p43
      %p45 = scmp.ne.s32.totalorder %s37, %s40
      %p46 = scmp.eq.s32.totalorder %s15, 0
      %p47 = por %p45, %p46
      %p48 = scmp.ne.s32.totalorder %s37, %s40
      %p49 = scmp.eq.s32.totalorder %s20, 1
      %p50 = por %p48, %p49
      %p51 = scmp.ne.s32.totalorder %s40, %s41
      %p52 = scmp.eq.s32.totalorder %s20, 0
      %p53 = por %p51, %p52
      %p54 = scmp.ne.s32.totalorder %s40, %s41
      %p55 = scmp.eq.s32.totalorder %s21, 1
      %p56 = por %p54, %p55
      %p58 = scmp.ne.s32.totalorder %s41, %s57
      %p59 = scmp.eq.s32.totalorder %s21, 0
      %p60 = por %p58, %p59
      %s61 = ssub.s32 %s22, %s34
      %s62 = ssub.s32 %s23, %s30
      %s63 = sor.u32 %s61, %s62
      %p64 = scmp.eq.s32.totalorder %s63, 0
      %s66 = sadd.s32 %s65, 1
      %s67 = scalar_select %p64, %s65, %s66
      %p70 = pneg %p64
      %p71 = scmp.eq.s32.totalorder %s15, 1
      %p72 = por %p70, %p71
      %p73 = scmp.ne.s32.totalorder %s65, %s68
      %p74 = scmp.eq.s32.totalorder %s15, 0
      %p75 = por %p73, %p74
      %p76 = scmp.ne.s32.totalorder %s65, %s68
      %p77 = scmp.eq.s32.totalorder %s20, 1
      %p78 = por %p76, %p77
      %p79 = scmp.ne.s32.totalorder %s68, %s69
      %p80 = scmp.eq.s32.totalorder %s20, 0
      %p81 = por %p79, %p80
      %p82 = scmp.ne.s32.totalorder %s68, %s69
      %p83 = scmp.eq.s32.totalorder %s21, 1
      %p84 = por %p82, %p83
      %p86 = scmp.ne.s32.totalorder %s69, %s85
      %p87 = scmp.eq.s32.totalorder %s21, 0
      %p88 = por %p86, %p87
      %s89 = ssub.s32 %s22, %s34
      %s90 = ssub.s32 %s23, %s30
      %s91 = sor.u32 %s89, %s90
      %p92 = scmp.eq.s32.totalorder %s91, 0
      %s94 = sadd.s32 %s93, 1
      %s95 = scalar_select %p92, %s93, %s94
      %p98 = pneg %p92
      %p99 = scmp.eq.s32.totalorder %s15, 1
      %p100 = por %p98, %p99
      %p101 = scmp.ne.s32.totalorder %s93, %s96
      %p102 = scmp.eq.s32.totalorder %s15, 0
      %p103 = por %p101, %p102
      %p104 = scmp.ne.s32.totalorder %s93, %s96
      %p105 = scmp.eq.s32.totalorder %s20, 1
      %p106 = por %p104, %p105
      %p107 = scmp.ne.s32.totalorder %s96, %s97
      %p108 = scmp.eq.s32.totalorder %s20, 0
      %p109 = por %p107, %p108
      %p110 = scmp.ne.s32.totalorder %s96, %s97
      %p111 = scmp.eq.s32.totalorder %s21, 1
      %p112 = por %p110, %p111
      %p114 = scmp.ne.s32.totalorder %s97, %s113
      %p115 = scmp.eq.s32.totalorder %s21, 0
      %p116 = por %p114, %p115
      %p117 = scmp.le.s32.totalorder 1, %s15
      %p118 = scmp.lt.s32.totalorder %s15, 3
      %p119 = pnand %p117, %p118
      %p120 = pneg %p119
      // Predicated region
      $region9: #{tpu_custom_call.1} parent=5 // pred_check
        _
      $region10: #{tpu_custom_call.1} parent=5 // pred_check_branch
        %122 = sbr.rel (%p119) target = $region12
      $region11: #{tpu_custom_call.1} parent=5 // pred_region
        %s123 = ssub.s32 %s15, 1
        // Predicated region
        $region13: #{tpu_custom_call.1} parent=11 // pred_check
          %p124 = pneg %p53
        $region14: #{tpu_custom_call.1} parent=11 // pred_check_branch
          %126 = sbr.rel (%p124) target = $region16
        $region15: #{tpu_custom_call.1} parent=11 // pred_region
          %128 = vsyncadd [#allocation3], 0
          %s129 = smul.addr %s25, 4
          %s130 = scalar_lea.hbm %s0, %s129
          %s132 = sshll.u32 %s130, 4
          %s133 = int_to_ptr.hbm [resolvable:$true] %s132
          %s134 = sshll.u32 [#allocation2], 4
          %s135 = int_to_ptr.vmem [resolvable:$true] %s134
          %137 = dma.hbm_to_vmem [thread:$0]  %s133, 64, %s135, [#allocation3]
        $region16: #{tpu_custom_call.1} parent=11 // pred_fallthru
          _
      $region12: #{tpu_custom_call.1} parent=5 // pred_fallthru
        _
      %p138 = scmp.lt.s32.totalorder %s15, 2
      // Predicated region
      $region17: #{tpu_custom_call.1} parent=5 // pred_check
        %p139 = pneg %p138
      $region18: #{tpu_custom_call.1} parent=5 // pred_check_branch
        %141 = sbr.rel (%p139) target = $region20
      $region19: #{tpu_custom_call.1} parent=5 // pred_region
        // Predicated region
        $region21: #{tpu_custom_call.1} parent=19 // pred_check
          %p142 = pneg %p75
        $region22: #{tpu_custom_call.1} parent=19 // pred_check_branch
          %144 = sbr.rel (%p142) target = $region24
        $region23: #{tpu_custom_call.1} parent=19 // pred_region
          %s145 = sand.u32 %s65, 1
          %s146 = scalar_lea.sflag [#allocation6], %s145
          %s147 = sand.u32 %s65, 1
          %s148 = smul.addr %s147, 16
          %s149 = scalar_lea.vmem [#allocation5], %s148
          %s150 = smul.u32 4, %s22
          %152 = vsyncadd %s146, 0
          %s153 = sadd.s32 %s23, %s150
          %s154 = smul.addr %s153, 4
          %s155 = scalar_lea.hbm %s1, %s154
          %s156 = sshll.u32 %s155, 4
          %s157 = int_to_ptr.hbm [resolvable:$true] %s156
          %s158 = sshll.u32 %s149, 4
          %s159 = int_to_ptr.vmem [resolvable:$true] %s158
          %164 = dma.hbm_to_vmem [thread:$0]  %s157, 256, %s159, %s146, 64, 64, 4
        $region24: #{tpu_custom_call.1} parent=19 // pred_fallthru
          _
      $region20: #{tpu_custom_call.1} parent=5 // pred_fallthru
        _
      %p165 = scmp.le.s32.totalorder 1, %s15
      %p166 = scmp.lt.s32.totalorder %s15, 3
      %p167 = pnand %p165, %p166
      %p168 = pneg %p167
      // Predicated region
      $region25: #{tpu_custom_call.1} parent=5 // pred_check
        _
      $region26: #{tpu_custom_call.1} parent=5 // pred_check_branch
        %170 = sbr.rel (%p167) target = $region28
      $region27: #{tpu_custom_call.1} parent=5 // pred_region
        %s171 = ssub.s32 %s15, 1
        // Predicated region
        $region29: #{tpu_custom_call.1} parent=27 // pred_check
          %p172 = pneg %p53
        $region30: #{tpu_custom_call.1} parent=27 // pred_check_branch
          %174 = sbr.rel (%p172) target = $region32
        $region31: #{tpu_custom_call.1} parent=27 // pred_region
          %176 = dma.done [#allocation3], 64
        $region32: #{tpu_custom_call.1} parent=27 // pred_fallthru
          _
        %s177 = sand.u32 %s68, 1
        %s178 = scalar_lea.sflag [#allocation6], %s177
        %s179 = sand.u32 %s68, 1
        %s180 = smul.addr %s179, 16
        %s181 = scalar_lea.vmem [#allocation5], %s180
        // Predicated region
        $region33: #{tpu_custom_call.1} parent=27 // pred_check
          %p182 = pneg %p81
        $region34: #{tpu_custom_call.1} parent=27 // pred_check_branch
          %184 = sbr.rel (%p182) target = $region36
        $region35: #{tpu_custom_call.1} parent=27 // pred_region
          %186 = dma.done %s178, 256
        $region36: #{tpu_custom_call.1} parent=27 // pred_fallthru
          _
        %p187 = pneg %p53
        %p188 = pneg %p50
        %s189 = sand.u32 %s68, 1
        %s190 = scalar_lea.sflag [#allocation6], %s189
        %s191 = sand.u32 %s68, 1
        %s192 = smul.addr %s191, 16
        %s193 = scalar_lea.vmem [#allocation5], %s192
        %p194 = pneg %p81
        %p195 = pneg %p78
        %p196 = pneg %p109
        %p197 = pneg %p106
        %s198 = sand.u32 %s96, 1
        %s199 = scalar_lea.sflag [#allocation4], %s198
        %s200 = sand.u32 %s96, 1
        %s201 = smul.addr %s200, 16
        %s202 = scalar_lea.vmem [#allocation7], %s201
        %s203 = smul.u32 4, %s24
        %s204 = smul.u32 4, %s24
        %v205 = vld [vmem:[%s181] sm:$0xf]
        %v206 = vld [vmem:[%s181 + $0x4] sm:$0xf]
        %v207 = vld [vmem:[%s181 + $0x8] sm:$0xf]
        %v208 = vld [vmem:[%s181 + $0xc] sm:$0xf]
        %v209 = vld [vmem:[#allocation2] sm:$0xf]
        %v210 = vmul.f32 %v205, %v209
        %v211 = vmul.f32 %v206, %v209
        %v212 = vmul.f32 %v207, %v209
        %v213 = vmul.f32 %v208, %v209
        %214 = vst [vmem:[%s202] sm:$0xf] %v210
        %215 = vst [vmem:[%s202 + $0x4] sm:$0xf] %v211
        %216 = vst [vmem:[%s202 + $0x8] sm:$0xf] %v212
        %217 = vst [vmem:[%s202 + $0xc] sm:$0xf] %v213
        %s218 = sand.u32 %s96, 1
        %s219 = scalar_lea.sflag [#allocation4], %s218
        %s220 = sand.u32 %s96, 1
        %s221 = smul.addr %s220, 16
        %s222 = scalar_lea.vmem [#allocation7], %s221
        // Predicated region
        $region37: #{tpu_custom_call.1} parent=27 // pred_check
          %p223 = pneg %p106
        $region38: #{tpu_custom_call.1} parent=27 // pred_check_branch
          %225 = sbr.rel (%p223) target = $region40
        $region39: #{tpu_custom_call.1} parent=27 // pred_region
          %s226 = smul.u32 4, %s24
          %228 = vsyncadd %s219, 0
          %s229 = sadd.s32 %s25, %s226
          %s230 = smul.addr %s229, 4
          %s231 = scalar_lea.hbm %s2, %s230
          %s232 = sshll.u32 %s222, 4
          %s233 = int_to_ptr.vmem [resolvable:$true] %s232
          %s234 = sshll.u32 %s231, 4
          %s235 = int_to_ptr.hbm [resolvable:$true] %s234
          %240 = dma.vmem_to_hbm [thread:$0]  %s233, 256, %s235, %s219, 64, 64, 4
        $region40: #{tpu_custom_call.1} parent=27 // pred_fallthru
          _
      $region28: #{tpu_custom_call.1} parent=5 // pred_fallthru
        _
      %p241 = scmp.le.s32.totalorder 2, %s15
      // Predicated region
      $region41: #{tpu_custom_call.1} parent=5 // pred_check
        %p242 = pneg %p241
      $region42: #{tpu_custom_call.1} parent=5 // pred_check_branch
        %244 = sbr.rel (%p242) target = $region44
      $region43: #{tpu_custom_call.1} parent=5 // pred_region
        %s245 = ssub.s32 %s15, 2
        // Predicated region
        $region45: #{tpu_custom_call.1} parent=43 // pred_check
          %p246 = pneg %p112
        $region46: #{tpu_custom_call.1} parent=43 // pred_check_branch
          %248 = sbr.rel (%p246) target = $region48
        $region47: #{tpu_custom_call.1} parent=43 // pred_region
          %s249 = sand.u32 %s97, 1
          %s250 = scalar_lea.sflag [#allocation4], %s249
          %s251 = sand.u32 %s97, 1
          %s252 = smul.addr %s251, 16
          %s253 = scalar_lea.vmem [#allocation7], %s252
          %255 = dma.done %s250, 256
        $region48: #{tpu_custom_call.1} parent=43 // pred_fallthru
          _
      $region44: #{tpu_custom_call.1} parent=5 // pred_fallthru
        _
    $region6: #{tpu_custom_call.1} parent=1 // loop_footer
      %s19 = sadd.s32 1, %s15
    $region7: #{tpu_custom_call.1} parent=1 // loop_footer_branch
      %14 = sbr.rel target = $region3
    $region8: #{tpu_custom_call.1} parent=1 // loop_exit
      _
    %256 = vsyncpa [#allocation3], 1
    %s257 = scalar_lea.sflag [#allocation3], 1
    %258 = vsyncpa %s257, 1
    %259 = vsyncpa [#allocation6], 1
    %s260 = scalar_lea.sflag [#allocation6], 1
    %261 = vsyncpa %s260, 1
    %262 = vsyncpa [#allocation4], 1
    %s263 = scalar_lea.sflag [#allocation4], 1
    %264 = vsyncpa %s263, 1

</llo_original>
